<compile_context>
chip_gen: v6e
topology: v6e:2x2x1
jax: 0.10.0
libtpu: 0.0.40
codegen_flags: <defaults>
</compile_context>

<pallas_src>
import functools

import jax
import jax.numpy as jnp
from jax.experimental import pallas as pl
from jax.experimental.pallas import tpu as pltpu


def _apply_nl(z, nl, threshold=1.0):
    """Mirror of nl_selector, applied on the f32 accumulator in-kernel."""
    if nl == "relu":
        return jnp.maximum(z, 0.0)
    if nl == "symrelu":
        return jnp.maximum(threshold - jnp.abs(z), 0.0)
    if nl == "tanh":
        return jnp.tanh(z)
    if nl == "sigmoid":
        return jax.nn.sigmoid(z)
    if nl is None:
        return z
    raise ValueError("unknown nonlinearity")


def _plain_rnn_kernel(h_ref, x_ref, w_ref, u_ref, o_ref, *, nl):
    # Two MXU matmuls accumulated in f32; nonlinearity on the VPU/EUP.
    acc = jnp.dot(h_ref[...], w_ref[...], preferred_element_type=jnp.float32)
    acc = acc + jnp.dot(x_ref[...], u_ref[...], preferred_element_type=jnp.float32)
    o_ref[...] = _apply_nl(acc, nl).astype(o_ref.dtype)


def _round_up(n, m):
    return ((n + m - 1) // m) * m


@functools.partial(jax.jit, static_argnames=("nl",))
def plain_rnn_forward(x, h, W, U, nl="relu"):
    """h_new = nl(h @ W + x @ U) via a fused Pallas matmul kernel."""
    B, I = x.shape
    _, H = h.shape

    # Pad rows to the f32 sublane tile (8) and output lanes to 128 so kernel
    # stores are lane-dense; no-ops when shapes are already tile-aligned.
    Bp = _round_up(B, 8)
    Hp = _round_up(H, 128)
    if Bp != B:
        x = jnp.pad(x, ((0, Bp - B), (0, 0)))
        h = jnp.pad(h, ((0, Bp - B), (0, 0)))
    if Hp != H:
        W = jnp.pad(W, ((0, 0), (0, Hp - H)))
        U = jnp.pad(U, ((0, 0), (0, Hp - H)))

    # Tile the output lane dimension (keeps W/U tiles small in VMEM for large
    # hidden sizes; Hp is a multiple of 128 so 128 always divides it).
    tn = 128
    for cand in (512, 256, 128):
        if Hp % cand == 0:
            tn = cand
            break
    grid = (Hp // tn,)

    out = pl.pallas_call(
        functools.partial(_plain_rnn_kernel, nl=nl),
        out_shape=jax.ShapeDtypeStruct((Bp, Hp), h.dtype),
        grid=grid,
        in_specs=[
            pl.BlockSpec((Bp, H), lambda j: (0, 0)),   # h (full, reused each tile)
            pl.BlockSpec((Bp, I), lambda j: (0, 0)),   # x (full, reused each tile)
            pl.BlockSpec((H, tn), lambda j: (0, j)),   # W column tile
            pl.BlockSpec((I, tn), lambda j: (0, j)),   # U column tile
        ],
        out_specs=pl.BlockSpec((Bp, tn), lambda j: (0, j)),
        compiler_params=pltpu.CompilerParams(
            dimension_semantics=("parallel",),
        ),
    )(h, x, W, U)

    return out[:B, :H]


def _ref_forward(x, h, W, U):
    return jnp.maximum(h @ W + x @ U, 0.0)


if __name__ == "__main__":
    key = jax.random.PRNGKey(0)
    kx, kh, kw, ku = jax.random.split(key, 4)

    # Tile-aligned small shapes: batch fills the 8-row sublane tile, hidden
    # fills one 128-wide lane tile (unmasked stores, full MXU columns).
    batch = 8
    input_size = 4
    hidden_size = 128
    g = 1.0

    x = jax.random.normal(kx, (batch, input_size), dtype=jnp.float32)
    h = jax.random.normal(kh, (batch, hidden_size), dtype=jnp.float32)

    # Deterministic parameter init mirroring PlainRNN.__init__:
    #   W ~ N(0, g / sqrt(hidden_size)), U ~ N(0, 1)
    W = (g / jnp.sqrt(jnp.float32(hidden_size))) * jax.random.normal(
        kw, (hidden_size, hidden_size), dtype=jnp.float32
    )
    U = jax.random.normal(ku, (input_size, hidden_size), dtype=jnp.float32)

    out = jax.block_until_ready(plain_rnn_forward(x, h, W, U))
    ref = _ref_forward(x, h, W, U)
    assert out.shape == (batch, hidden_size)
    assert jnp.allclose(out, ref, atol=1e-5, rtol=1e-5)

    # Also exercise the padding path (unaligned batch / hidden), matching the
    # tiny-shape contract of the original module.
    b2, i2, h2 = 2, 4, 32
    x2 = jax.random.normal(kx, (b2, i2), dtype=jnp.float32)
    h2_ = jax.random.normal(kh, (b2, h2), dtype=jnp.float32)
    W2 = (g / jnp.sqrt(jnp.float32(h2))) * jax.random.normal(
        kw, (h2, h2), dtype=jnp.float32
    )
    U2 = jax.random.normal(ku, (i2, h2), dtype=jnp.float32)
    out2 = jax.block_until_ready(plain_rnn_forward(x2, h2_, W2, U2))
    ref2 = _ref_forward(x2, h2_, W2, U2)
    assert out2.shape == (b2, h2)
    assert jnp.allclose(out2, ref2, atol=1e-5, rtol=1e-5)

    # Exercise the multi-tile grid path (hidden > one lane tile).
    b3, i3, h3 = 8, 16, 256
    x3 = jax.random.normal(kx, (b3, i3), dtype=jnp.float32)
    h3_ = jax.random.normal(kh, (b3, h3), dtype=jnp.float32)
    W3 = (g / jnp.sqrt(jnp.float32(h3))) * jax.random.normal(
        kw, (h3, h3), dtype=jnp.float32
    )
    U3 = jax.random.normal(ku, (i3, h3), dtype=jnp.float32)
    out3 = jax.block_until_ready(plain_rnn_forward(x3, h3_, W3, U3))
    ref3 = _ref_forward(x3, h3_, W3, U3)
    assert out3.shape == (b3, h3)
    assert jnp.allclose(out3, ref3, atol=1e-5, rtol=1e-5)

    print("KERNEL_OK")
</pallas_src>

<mosaic_0001>
module attributes {stable_mosaic.version = 11 : i64} {
  func.func @_plain_rnn_kernel(%arg0: i32, %arg1: memref<8x128xf32, #tpu.memory_space<vmem>>, %arg2: memref<8x4xf32, #tpu.memory_space<vmem>>, %arg3: memref<128x128xf32, #tpu.memory_space<vmem>>, %arg4: memref<4x128xf32, #tpu.memory_space<vmem>>, %arg5: memref<8x128xf32, #tpu.memory_space<vmem>>) attributes {dimension_semantics = [#tpu.dimension_semantics<parallel>], iteration_bounds = array<i64: 1>, scalar_prefetch = 0 : i64, scratch_operands = 0 : i64, tpu.core_type = #tpu.core_type<tc>, window_params = [{pipeline_mode = #tpu.pipeline_mode<synchronous>, transform_indices = @transform_0, window_bounds = array<i64: 8, 128>}, {pipeline_mode = #tpu.pipeline_mode<synchronous>, transform_indices = @transform_1, window_bounds = array<i64: 8, 4>}, {transform_indices = @transform_2, window_bounds = array<i64: 128, 128>}, {transform_indices = @transform_3, window_bounds = array<i64: 4, 128>}, {transform_indices = @transform_4, window_bounds = array<i64: 8, 128>}]} {
    %c0 = arith.constant 0 : index
    %c0_0 = arith.constant 0 : index
    %0 = vector.load %arg1[%c0, %c0_0] : memref<8x128xf32, #tpu.memory_space<vmem>>, vector<8x128xf32>
    %c0_1 = arith.constant 0 : index
    %c0_2 = arith.constant 0 : index
    %1 = vector.load %arg3[%c0_1, %c0_2] : memref<128x128xf32, #tpu.memory_space<vmem>>, vector<128x128xf32>
    %cst = arith.constant dense<0.000000e+00> : vector<8x128xf32>
    %2 = tpu.matmul %0, %1, %cst {dimension_numbers = #tpu.dot_dimension_numbers<[1], [0], [0], [1], [0, 0, 1, 1], [], []>} : vector<8x128xf32>, vector<128x128xf32>, vector<8x128xf32> -> vector<8x128xf32>
    %c0_3 = arith.constant 0 : index
    %c0_4 = arith.constant 0 : index
    %3 = vector.load %arg2[%c0_3, %c0_4] : memref<8x4xf32, #tpu.memory_space<vmem>>, vector<8x4xf32>
    %c0_5 = arith.constant 0 : index
    %c0_6 = arith.constant 0 : index
    %4 = vector.load %arg4[%c0_5, %c0_6] : memref<4x128xf32, #tpu.memory_space<vmem>>, vector<4x128xf32>
    %cst_7 = arith.constant dense<0.000000e+00> : vector<8x128xf32>
    %5 = tpu.matmul %3, %4, %cst_7 {dimension_numbers = #tpu.dot_dimension_numbers<[1], [0], [0], [1], [0, 0, 1, 1], [], []>} : vector<8x4xf32>, vector<4x128xf32>, vector<8x128xf32> -> vector<8x128xf32>
    %6 = arith.addf %2, %5 : vector<8x128xf32>
    %cst_8 = arith.constant 0.000000e+00 : f32
    %7 = vector.broadcast %cst_8 : f32 to vector<8x128xf32>
    %8 = arith.maximumf %6, %7 : vector<8x128xf32>
    %c0_9 = arith.constant 0 : index
    %c0_10 = arith.constant 0 : index
    %9 = vector.load %arg5[%c0_9, %c0_10] : memref<8x128xf32, #tpu.memory_space<vmem>>, vector<8x128xf32>
    tpu.vector_store %arg5[%c0_9, %c0_10], %8 {strides = array<i32>} : memref<8x128xf32, #tpu.memory_space<vmem>>, vector<8x128xf32>,
    return
  }
  func.func @transform_0(%arg0: i32) -> (i32, i32) {
    %c0_i32 = arith.constant 0 : i32
    %c0_i32_0 = arith.constant 0 : i32
    %c0_i32_1 = arith.constant 0 : i32
    return %c0_i32, %c0_i32_0 : i32, i32
  }
  func.func @transform_1(%arg0: i32) -> (i32, i32) {
    %c0_i32 = arith.constant 0 : i32
    %c0_i32_0 = arith.constant 0 : i32
    %c0_i32_1 = arith.constant 0 : i32
    return %c0_i32, %c0_i32_0 : i32, i32
  }
  func.func @transform_2(%arg0: i32) -> (i32, i32) {
    %c0_i32 = arith.constant 0 : i32
    %c0_i32_0 = arith.constant 0 : i32
    return %c0_i32, %arg0 : i32, i32
  }
  func.func @transform_3(%arg0: i32) -> (i32, i32) {
    %c0_i32 = arith.constant 0 : i32
    %c0_i32_0 = arith.constant 0 : i32
    return %c0_i32, %arg0 : i32, i32
  }
  func.func @transform_4(%arg0: i32) -> (i32, i32) {
    %c0_i32 = arith.constant 0 : i32
    %c0_i32_0 = arith.constant 0 : i32
    return %c0_i32, %arg0 : i32, i32
  }
}

</mosaic_0001>

<llo_original>
// kernel: plain_rnn_forward.1
$region0: #{plain_rnn_forward.1}
  #allocation0 [shape = 'u32[]', space=smem, size = 0x4, offset = 0x4, fixed_abs, tag = 'smem constant byte address 0x4 - core index']
  #allocation1 [shape = 'u32[144,128]{1,0:T(1,128)}', space=vmem, size = 0x12000, scoped, tag = 'internal scratch']
  %s0 = inlined_call_operand.vmem [shape: f32[8,128], index: 0, kind: input, shape index: {}]
  %s1 = inlined_call_operand.vmem [shape: f32[8,4], index: 1, kind: input, shape index: {}]
  %s2 = inlined_call_operand.hbm [shape: f32[128,128], index: 2, kind: input, shape index: {}]
  %s3 = inlined_call_operand.vmem [shape: f32[4,128], index: 3, kind: input, shape index: {}]
  %s4 = inlined_call_operand.hbm [shape: f32[8,128], index: 4, kind: output, shape index: {}]
  %s5 = sld [smem:[#allocation0]]
  $region30: #{plain_rnn_forward.1} parent=0
    _
  %s7 = ssub.s32 1, %s5
  %s8 = scalar_select 0, %s7, %s5
  $region1: #{plain_rnn_forward.1} parent=0
    #allocation2 [shape = 'u8[65536]{0}', space=vmem, size = 0x10000, scoped, tag = 'input window, operand 2, single buffered']
    #allocation3 [shape = 's32[1]{0}', space=sflag, size = 0x4, scoped, tag = 'scoped memory for plain_rnn_forward.1']
    #allocation4 [shape = 's32[1]{0}', space=sflag, size = 0x4, scoped, tag = 'scoped memory for plain_rnn_forward.1']
    #allocation5 [shape = 'u8[4096]{0}', space=vmem, size = 0x1000, scoped, tag = 'output window, operand 0, single buffered']
    %9 = vsyncpa [#allocation3], 0
    %10 = vsyncpa [#allocation4], 0
    // Predicated region
    $region2: #{plain_rnn_forward.1} parent=1 // pred_check
      _
    $region3: #{plain_rnn_forward.1} parent=1 // pred_check_branch
      %12 = sbr.rel (0) target = $region5
    $region4: #{plain_rnn_forward.1} parent=1 // pred_region
      _
    $region5: #{plain_rnn_forward.1} parent=1 // pred_fallthru
      _
    // Predicated region
    $region6: #{plain_rnn_forward.1} parent=1 // pred_check
      _
    $region7: #{plain_rnn_forward.1} parent=1 // pred_check_branch
      %14 = sbr.rel (0) target = $region9
    $region8: #{plain_rnn_forward.1} parent=1 // pred_region
      _
    $region9: #{plain_rnn_forward.1} parent=1 // pred_fallthru
      _
    // Predicated region
    $region10: #{plain_rnn_forward.1} parent=1 // pred_check
      _
    $region11: #{plain_rnn_forward.1} parent=1 // pred_check_branch
      %16 = sbr.rel (0) target = $region13
    $region12: #{plain_rnn_forward.1} parent=1 // pred_region
      %s18 = ssub.s32 2048, 2048
      %19 = vsyncadd [#allocation3], %s18
      %s20 = sshll.u32 [#allocation2], 4
      %s21 = int_to_ptr.vmem [resolvable:$true] %s20
      %26 = dma.hbm_to_vmem [thread:$0]  %s2, 2048, %s21, [#allocation3], 128, 128, 8
    $region13: #{plain_rnn_forward.1} parent=1 // pred_fallthru
      _
    // Predicated region
    $region14: #{plain_rnn_forward.1} parent=1 // pred_check
      _
    $region15: #{plain_rnn_forward.1} parent=1 // pred_check_branch
      %28 = sbr.rel (0) target = $region17
    $region16: #{plain_rnn_forward.1} parent=1 // pred_region
      _
    $region17: #{plain_rnn_forward.1} parent=1 // pred_fallthru
      _
    // Predicated region
    $region18: #{plain_rnn_forward.1} parent=1 // pred_check
      _
    $region19: #{plain_rnn_forward.1} parent=1 // pred_check_branch
      %30 = sbr.rel (0) target = $region21
    $region20: #{plain_rnn_forward.1} parent=1 // pred_region
      %31 = dma.done [#allocation3], 2048
    $region21: #{plain_rnn_forward.1} parent=1 // pred_fallthru
      _
    %v32 = vld [vmem:[%s0] sm:$0xff]
    %v33 = vld [vmem:[#allocation2] sm:$0xff]
    %v34 = vld [vmem:[#allocation2 + $0x8] sm:$0xff]
    %v35 = vld [vmem:[#allocation2 + $0x10] sm:$0xff]
    %v36 = vld [vmem:[#allocation2 + $0x18] sm:$0xff]
    %v37 = vld [vmem:[#allocation2 + $0x20] sm:$0xff]
    %v38 = vld [vmem:[#allocation2 + $0x28] sm:$0xff]
    %v39 = vld [vmem:[#allocation2 + $0x30] sm:$0xff]
    %v40 = vld [vmem:[#allocation2 + $0x38] sm:$0xff]
    %v41 = vld [vmem:[#allocation2 + $0x40] sm:$0xff]
    %v42 = vld [vmem:[#allocation2 + $0x48] sm:$0xff]
    %v43 = vld [vmem:[#allocation2 + $0x50] sm:$0xff]
    %v44 = vld [vmem:[#allocation2 + $0x58] sm:$0xff]
    %v45 = vld [vmem:[#allocation2 + $0x60] sm:$0xff]
    %v46 = vld [vmem:[#allocation2 + $0x68] sm:$0xff]
    %v47 = vld [vmem:[#allocation2 + $0x70] sm:$0xff]
    %v48 = vld [vmem:[#allocation2 + $0x78] sm:$0xff]
    %v49 = vld [vmem:[%s1] sm:$0xff]
    %v50 = vld [vmem:[%s3] sm:$0xf]
    %vm51 = vcmask 31744
    %v53 = vsel %vm51, %v49, 0
    %vm55 = vcmask 1043456
    %v57 = vsel %vm55, %v50, 0
    %59 = vmatprep.subr.mxu0 0.0
    %60 = vmatpush1.msra.mxu0 0.0
    %61 = vmatprep.subr.mxu0 0.0
    %62 = vmatpush1.msra.mxu0 0.0
    %63 = vmatprep.subr.mxu0 0.0
    %64 = vmatpush1.msra.mxu0 0.0
    %65 = vmatprep.subr.mxu0 0.0
    %66 = vmatpush1.msra.mxu0 0.0
    %67 = vmatprep.subr.mxu0 0.0
    %68 = vmatpush1.msra.mxu0 0.0
    %69 = vmatprep.subr.mxu0 0.0
    %70 = vmatpush1.msra.mxu0 0.0
    %71 = vmatprep.subr.mxu0 0.0
    %72 = vmatpush1.msra.mxu0 0.0
    %73 = vmatprep.subr.mxu0 0.0
    %74 = vmatpush1.msra.mxu0 0.0
    %75 = vmatprep.subr.mxu0 0.0
    %76 = vmatpush1.msra.mxu0 0.0
    %77 = vmatprep.subr.mxu0 0.0
    %78 = vmatpush1.msra.mxu0 0.0
    %79 = vmatprep.subr.mxu0 0.0
    %80 = vmatpush1.msra.mxu0 0.0
    %81 = vmatprep.subr.mxu0 0.0
    %82 = vmatpush1.msra.mxu0 0.0
    %83 = vmatprep.subr.mxu0 0.0
    %84 = vmatpush1.msra.mxu0 0.0
    %85 = vmatprep.subr.mxu0 0.0
    %86 = vmatpush1.msra.mxu0 0.0
    %87 = vmatprep.subr.mxu0 0.0
    %88 = vmatpush1.msra.mxu0 0.0
    %89 = vmatprep.subr.mxu0 0.0
    %90 = vmatpush1.msra.mxu0 %v57
    %91 = vmatprep.subr.mxu0 0.0
    %92 = vmatpush2.msra.mxu0 0.0
    %93 = vmatprep.subr.mxu0 0.0
    %94 = vmatpush2.msra.mxu0 0.0
    %95 = vmatprep.subr.mxu0 0.0
    %96 = vmatpush2.msra.mxu0 0.0
    %97 = vmatprep.subr.mxu0 0.0
    %98 = vmatpush2.msra.mxu0 0.0
    %99 = vmatprep.subr.mxu0 0.0
    %100 = vmatpush2.msra.mxu0 0.0
    %101 = vmatprep.subr.mxu0 0.0
    %102 = vmatpush2.msra.mxu0 0.0
    %103 = vmatprep.subr.mxu0 0.0
    %104 = vmatpush2.msra.mxu0 0.0
    %105 = vmatprep.subr.mxu0 0.0
    %106 = vmatpush2.msra.mxu0 0.0
    %107 = vmatprep.subr.mxu0 0.0
    %108 = vmatpush2.msra.mxu0 0.0
    %109 = vmatprep.subr.mxu0 0.0
    %110 = vmatpush2.msra.mxu0 0.0
    %111 = vmatprep.subr.mxu0 0.0
    %112 = vmatpush2.msra.mxu0 0.0
    %113 = vmatprep.subr.mxu0 0.0
    %114 = vmatpush2.msra.mxu0 0.0
    %115 = vmatprep.subr.mxu0 0.0
    %116 = vmatpush2.msra.mxu0 0.0
    %117 = vmatprep.subr.mxu0 0.0
    %118 = vmatpush2.msra.mxu0 0.0
    %119 = vmatprep.subr.mxu0 0.0
    %120 = vmatpush2.msra.mxu0 0.0
    %121 = vmatprep.subr.mxu0 0.0
    %122 = vmatpush2.msra.mxu0 0.0
    %123 = vmatprep.mubr.f32.mxu0 0.0
    %124 = vmatmul.mubr.f32.gmra.mxu0 %v53
    %v125 = vpop.f32.mrf.mxu0
    %v126 = vadd.f32 0.0, %v125
    %v127 = vpop.f32.mrf.mxu0
    %128 = vdwg.mxu0
    %129 = vmatprep.subr.mxu0 0.0
    %130 = vmatpush1.msra.mxu0 %v48
    %131 = vmatprep.subr.mxu0 0.0
    %132 = vmatpush1.msra.mxu0 %v47
    %133 = vmatprep.subr.mxu0 0.0
    %134 = vmatpush1.msra.mxu0 %v46
    %135 = vmatprep.subr.mxu0 0.0
    %136 = vmatpush1.msra.mxu0 %v45
    %137 = vmatprep.subr.mxu0 0.0
    %138 = vmatpush1.msra.mxu0 %v44
    %139 = vmatprep.subr.mxu0 0.0
    %140 = vmatpush1.msra.mxu0 %v43
    %141 = vmatprep.subr.mxu0 0.0
    %142 = vmatpush1.msra.mxu0 %v42
    %143 = vmatprep.subr.mxu0 0.0
    %144 = vmatpush1.msra.mxu0 %v41
    %145 = vmatprep.subr.mxu0 0.0
    %146 = vmatpush1.msra.mxu0 %v40
    %147 = vmatprep.subr.mxu0 0.0
    %148 = vmatpush1.msra.mxu0 %v39
    %149 = vmatprep.subr.mxu0 0.0
    %150 = vmatpush1.msra.mxu0 %v38
    %151 = vmatprep.subr.mxu0 0.0
    %152 = vmatpush1.msra.mxu0 %v37
    %153 = vmatprep.subr.mxu0 0.0
    %154 = vmatpush1.msra.mxu0 %v36
    %155 = vmatprep.subr.mxu0 0.0
    %156 = vmatpush1.msra.mxu0 %v35
    %157 = vmatprep.subr.mxu0 0.0
    %158 = vmatpush1.msra.mxu0 %v34
    %159 = vmatprep.subr.mxu0 0.0
    %160 = vmatpush1.msra.mxu0 %v33
    %161 = vmatprep.subr.mxu0 0.0
    %162 = vmatpush2.msra.mxu0 0.0
    %163 = vmatprep.subr.mxu0 0.0
    %164 = vmatpush2.msra.mxu0 0.0
    %165 = vmatprep.subr.mxu0 0.0
    %166 = vmatpush2.msra.mxu0 0.0
    %167 = vmatprep.subr.mxu0 0.0
    %168 = vmatpush2.msra.mxu0 0.0
    %169 = vmatprep.subr.mxu0 0.0
    %170 = vmatpush2.msra.mxu0 0.0
    %171 = vmatprep.subr.mxu0 0.0
    %172 = vmatpush2.msra.mxu0 0.0
    %173 = vmatprep.subr.mxu0 0.0
    %174 = vmatpush2.msra.mxu0 0.0
    %175 = vmatprep.subr.mxu0 0.0
    %176 = vmatpush2.msra.mxu0 0.0
    %177 = vmatprep.subr.mxu0 0.0
    %178 = vmatpush2.msra.mxu0 0.0
    %179 = vmatprep.subr.mxu0 0.0
    %180 = vmatpush2.msra.mxu0 0.0
    %181 = vmatprep.subr.mxu0 0.0
    %182 = vmatpush2.msra.mxu0 0.0
    %183 = vmatprep.subr.mxu0 0.0
    %184 = vmatpush2.msra.mxu0 0.0
    %185 = vmatprep.subr.mxu0 0.0
    %186 = vmatpush2.msra.mxu0 0.0
    %187 = vmatprep.subr.mxu0 0.0
    %188 = vmatpush2.msra.mxu0 0.0
    %189 = vmatprep.subr.mxu0 0.0
    %190 = vmatpush2.msra.mxu0 0.0
    %191 = vmatprep.subr.mxu0 0.0
    %192 = vmatpush2.msra.mxu0 0.0
    %193 = vmatprep.mubr.f32.mxu0 0.0
    %194 = vmatmul.mubr.f32.gmra.mxu0 %v32
    %v195 = vpop.f32.mrf.mxu0
    %v196 = vadd.f32 %v126, %v195
    %v197 = vpop.f32.mrf.mxu0
    %198 = vdwg.mxu0
    %v199 = vmax.f32 %v196, 0.0
    %200 = vst [vmem:[#allocation5] sm:$0xff] %v199
    // Predicated region
    $region22: #{plain_rnn_forward.1} parent=1 // pred_check
      _
    $region23: #{plain_rnn_forward.1} parent=1 // pred_check_branch
      %202 = sbr.rel (0) target = $region25
    $region24: #{plain_rnn_forward.1} parent=1 // pred_region
      %s204 = ssub.s32 128, 128
      %205 = vsyncadd [#allocation4], %s204
      %s207 = sshll.u32 [#allocation5], 4
      %s208 = int_to_ptr.vmem [resolvable:$true] %s207
      %210 = dma.vmem_to_hbm [thread:$0]  %s208, 128, %s4, [#allocation4]
    $region25: #{plain_rnn_forward.1} parent=1 // pred_fallthru
      _
    // Predicated region
    $region26: #{plain_rnn_forward.1} parent=1 // pred_check
      _
    $region27: #{plain_rnn_forward.1} parent=1 // pred_check_branch
      %212 = sbr.rel (0) target = $region29
    $region28: #{plain_rnn_forward.1} parent=1 // pred_region
      %213 = dma.done [#allocation4], 128
    $region29: #{plain_rnn_forward.1} parent=1 // pred_fallthru
      _
    %214 = vsyncpa [#allocation3], 1
    %215 = vsyncpa [#allocation4], 1

</llo_original>
